<compile_context>
chip_gen: v5e
topology: v5e:2x2
jax: 0.10.0
libtpu: 0.0.40
codegen_flags: <defaults>
</compile_context>

<pallas_src>
import functools

import jax
import jax.numpy as jnp
from jax.experimental import pallas as pl


# ------------------------------- kernel -------------------------------------

def _fused_spectral_kernel(x_ref, w1t_ref, b1_ref, wp_ref, bp_ref,
                           w2t_ref, b2_ref, o_ref, *, nbatch, seg):
    # x_ref  : (Cin, B*S)  strided input, packed batch-major on the lane axis
    # w1t_ref: (Hd, Cin)   conv-branch 1x1 weight, BN1 scale folded, transposed
    # b1_ref : (Hd, 1)     folded conv bias + BN1 shift
    # wp_ref : (Cin, Hd)   pool-branch 1x1 weight (original orientation)
    # bp_ref : (1, Hd)     pool-branch bias
    # w2t_ref: (Cout, Hd)  out-conv 1x1 weight, BN2 scale folded, transposed
    # b2_ref : (Cout, 1)   folded out-conv bias + BN2 shift
    # o_ref  : (Cout, B*S)
    x = x_ref[...]                                                    # (Cin, BS)

    # ---- conv branch for ALL batches at once: one lane-dense MXU matmul ----
    h = jnp.dot(w1t_ref[...], x, preferred_element_type=jnp.float32)  # (Hd, BS)
    h = jnp.clip(h + b1_ref[...], 0.0, 6.0)                           # BN1+ReLU6

    # ---- pool branch + spectral attention, per batch lane-segment ----------
    # nbatch/seg are static, so this unrolls (B is small); each segment is a
    # static lane slice of the packed axis.
    for b in range(nbatch):
        lo = b * seg
        xb = x[:, lo:lo + seg]                                        # (Cin, S)
        xm = jnp.mean(xb, axis=-1, keepdims=True)                     # (Cin, 1)
        v = jnp.sum(wp_ref[...] * xm, axis=0, keepdims=True) + bp_ref[...]  # (1, Hd)
        v = v - jnp.max(v, axis=-1, keepdims=True)                    # stable softmax
        e = jnp.exp(v)
        attn = e / jnp.sum(e, axis=-1, keepdims=True)                 # (1, Hd)

        # Fold attention into the tiny out-conv weight (exact, since attn is
        # constant per channel within a batch): (w2t*attn) @ h == w2t @ (h*attn)
        yb = jnp.dot(w2t_ref[...] * attn, h[:, lo:lo + seg],
                     preferred_element_type=jnp.float32)              # (Cout, S)
        o_ref[:, lo:lo + seg] = jnp.clip(yb + b2_ref[...], 0.0, 6.0
                                         ).astype(o_ref.dtype)        # BN2+ReLU6


# ------------------------------- wrapper ------------------------------------

def spectral_attention_block(x_nchw, params, stride):
    B, Cin, H, W = x_nchw.shape
    hidden = params["w1"].shape[1]
    Cout = params["w2"].shape[1]
    eps = 1e-5

    # 1x1 conv with stride == spatial subsample followed by channel matmuls.
    # Pack (batch, strided spatial) onto the lane axis so the kernel runs as
    # a single step with a lane-dense output (B*S = 128 at the test shapes).
    # TODO(synk): fuse the stride subsample + packing into the kernel
    # (strided sublane DMA / in-kernel selection) to drop this one wrapper
    # gather, and for production-scale S add an S grid axis (128-multiple
    # tiles, pool mean accumulated in VMEM scratch, attention + out-conv
    # applied on the last tile) so a block stays inside v7x's 64 MiB VMEM.
    xs = x_nchw[:, :, ::stride, ::stride]                    # (B, Cin, Hs, Ws)
    Hs, Ws = xs.shape[2], xs.shape[3]
    S = Hs * Ws
    BS = B * S
    xp = jnp.transpose(xs, (1, 0, 2, 3)).reshape(Cin, BS).astype(jnp.float32)

    # Fold conv bias + BatchNorm (inference) into per-channel scale/shift and
    # fold the scales into the tiny 1x1 weights (trace-time work).
    sc1 = params["gamma1"] / jnp.sqrt(params["var1"] + eps)
    bb1 = (params["b1"] - params["mean1"]) * sc1 + params["beta1"]
    sc2 = params["gamma2"] / jnp.sqrt(params["var2"] + eps)
    bb2 = (params["b2"] - params["mean2"]) * sc2 + params["beta2"]

    w1t = (params["w1"] * sc1[None, :]).T.astype(jnp.float32)   # (Hd, Cin)
    w2t = (params["w2"] * sc2[None, :]).T.astype(jnp.float32)   # (Cout, Hd)
    wp = params["wp"].astype(jnp.float32)                       # (Cin, Hd)
    b1c = bb1.reshape(hidden, 1).astype(jnp.float32)
    b2c = bb2.reshape(Cout, 1).astype(jnp.float32)
    bpr = params["bp"].reshape(1, hidden).astype(jnp.float32)

    # bf16 x/h operands (f32 accumulation + f32 epilogue) halve HBM bytes and
    # hit the native bf16 MXU path on v6e/v7x, but do not meet the 1e-4 check
    # below, so f32 is kept here.
    kernel = functools.partial(_fused_spectral_kernel, nbatch=B, seg=S)
    y = pl.pallas_call(
        kernel,
        out_shape=jax.ShapeDtypeStruct((Cout, BS), jnp.float32),
    )(xp, w1t, b1c, wp, bpr, w2t, b2c)

    # (Cout, B*S) -> (B, Cout, Hs, Ws)
    return jnp.transpose(y.reshape(Cout, B, Hs, Ws), (1, 0, 2, 3))


# ------------------------------ reference -----------------------------------

def reference(x_nchw, params, stride):
    xs = x_nchw[:, :, ::stride, ::stride]
    xc = jnp.transpose(xs, (0, 2, 3, 1)).astype(jnp.float32)  # B,Hs,Ws,Cin
    eps = 1e-5
    conv = jnp.einsum("bhwc,cd->bhwd", xc, params["w1"]) + params["b1"]
    conv = (conv - params["mean1"]) / jnp.sqrt(params["var1"] + eps) \
           * params["gamma1"] + params["beta1"]
    conv = jnp.clip(conv, 0.0, 6.0)
    pool = jnp.einsum("bhwc,cd->bhwd", xc, params["wp"]) + params["bp"]
    pool = jnp.mean(pool, axis=(1, 2), keepdims=True)
    pool = jax.nn.softmax(pool, axis=-1)
    out = conv * pool
    y = jnp.einsum("bhwd,de->bhwe", out, params["w2"]) + params["b2"]
    y = (y - params["mean2"]) / jnp.sqrt(params["var2"] + eps) \
        * params["gamma2"] + params["beta2"]
    y = jnp.clip(y, 0.0, 6.0)
    return jnp.transpose(y, (0, 3, 1, 2))


# -------------------------------- main --------------------------------------

if __name__ == "__main__":
    B, in_ch, H, W = 2, 4, 16, 16
    hidden, out_ch, stride = 32, 8, 2

    key = jax.random.PRNGKey(0)
    keys = jax.random.split(key, 12)

    params = {
        # conv_branch: Conv2d(in_ch, hidden, 1, stride) + BN(hidden)
        "w1": jax.random.normal(keys[0], (in_ch, hidden), jnp.float32) * 0.2,
        "b1": jax.random.normal(keys[1], (hidden,), jnp.float32) * 0.05,
        "gamma1": 1.0 + 0.1 * jax.random.normal(keys[2], (hidden,), jnp.float32),
        "beta1": 0.05 * jax.random.normal(keys[3], (hidden,), jnp.float32),
        "mean1": 0.1 * jax.random.normal(keys[4], (hidden,), jnp.float32),
        "var1": 0.5 + jax.random.uniform(keys[5], (hidden,), jnp.float32),
        # pool_branch: Conv2d(in_ch, hidden, 1, stride)
        "wp": jax.random.normal(keys[6], (in_ch, hidden), jnp.float32) * 0.2,
        "bp": jax.random.normal(keys[7], (hidden,), jnp.float32) * 0.05,
        # out_conv: Conv2d(hidden, out_ch, 1, 1) + BN(out_ch)
        "w2": jax.random.normal(keys[8], (hidden, out_ch), jnp.float32) * 0.2,
        "b2": jax.random.normal(keys[9], (out_ch,), jnp.float32) * 0.05,
        "gamma2": 1.0 + 0.1 * jax.random.normal(keys[10], (out_ch,), jnp.float32),
        "beta2": 0.05 * jax.random.normal(keys[11], (out_ch,), jnp.float32),
        "mean2": jnp.zeros((out_ch,), jnp.float32),
        "var2": jnp.ones((out_ch,), jnp.float32),
    }

    x = jax.random.normal(jax.random.PRNGKey(42), (B, in_ch, H, W), jnp.float32)

    out = spectral_attention_block(x, params, stride)
    out = jax.block_until_ready(out)

    ref = reference(x, params, stride)
    assert out.shape == (B, out_ch, H // stride, W // stride), out.shape
    assert jnp.allclose(out, ref, atol=1e-4, rtol=1e-4), \
        float(jnp.max(jnp.abs(out - ref)))

    print("KERNEL_OK")
</pallas_src>

<mosaic_0001>
module attributes {stable_mosaic.version = 11 : i64} {
  func.func @_fused_spectral_kernel(%arg0: memref<4x128xf32, #tpu.memory_space<vmem>>, %arg1: memref<32x4xf32, #tpu.memory_space<vmem>>, %arg2: memref<32x1xf32, #tpu.memory_space<vmem>>, %arg3: memref<4x32xf32, #tpu.memory_space<vmem>>, %arg4: memref<1x32xf32, #tpu.memory_space<vmem>>, %arg5: memref<8x32xf32, #tpu.memory_space<vmem>>, %arg6: memref<8x1xf32, #tpu.memory_space<vmem>>, %arg7: memref<8x128xf32, #tpu.memory_space<vmem>>) attributes {dimension_semantics = [], scalar_prefetch = 0 : i64, scratch_operands = 0 : i64, tpu.core_type = #tpu.core_type<tc>} {
    %c0 = arith.constant 0 : index
    %c0_0 = arith.constant 0 : index
    %0 = vector.load %arg0[%c0, %c0_0] : memref<4x128xf32, #tpu.memory_space<vmem>>, vector<4x128xf32>
    %c0_1 = arith.constant 0 : index
    %c0_2 = arith.constant 0 : index
    %1 = vector.load %arg1[%c0_1, %c0_2] : memref<32x4xf32, #tpu.memory_space<vmem>>, vector<32x4xf32>
    %cst = arith.constant dense<0.000000e+00> : vector<32x128xf32>
    %2 = tpu.matmul %1, %0, %cst {dimension_numbers = #tpu.dot_dimension_numbers<[1], [0], [0], [1], [0, 0, 1, 1], [], []>} : vector<32x4xf32>, vector<4x128xf32>, vector<32x128xf32> -> vector<32x128xf32>
    %c0_3 = arith.constant 0 : index
    %c0_4 = arith.constant 0 : index
    %3 = vector.load %arg2[%c0_3, %c0_4] : memref<32x1xf32, #tpu.memory_space<vmem>>, vector<32x1xf32>
    %4 = vector.broadcast %3 : vector<32x1xf32> to vector<32x128xf32>
    %5 = arith.addf %2, %4 : vector<32x128xf32>
    %cst_5 = arith.constant 0.000000e+00 : f32
    %cst_6 = arith.constant 6.000000e+00 : f32
    %6 = vector.broadcast %cst_5 : f32 to vector<32x128xf32>
    %7 = arith.maximumf %6, %5 : vector<32x128xf32>
    %8 = vector.broadcast %cst_6 : f32 to vector<32x128xf32>
    %9 = arith.minimumf %8, %7 : vector<32x128xf32>
    %10 = vector.extract_strided_slice %0 {offsets = [0, 0], sizes = [4, 64], strides = [1, 1]} : vector<4x128xf32> to vector<4x64xf32>
    %cst_7 = arith.constant dense<0.000000e+00> : vector<4xf32>
    %11 = vector.multi_reduction <add>, %10, %cst_7 [1] : vector<4x64xf32> to vector<4xf32>
    %12 = vector.shape_cast %11 : vector<4xf32> to vector<4x1xf32>
    %cst_8 = arith.constant 6.400000e+01 : f32
    %13 = vector.broadcast %cst_8 : f32 to vector<4x1xf32>
    %14 = arith.divf %12, %13 : vector<4x1xf32>
    %c0_9 = arith.constant 0 : index
    %c0_10 = arith.constant 0 : index
    %15 = vector.load %arg3[%c0_9, %c0_10] : memref<4x32xf32, #tpu.memory_space<vmem>>, vector<4x32xf32>
    %16 = vector.broadcast %14 : vector<4x1xf32> to vector<4x32xf32>
    %17 = arith.mulf %15, %16 : vector<4x32xf32>
    %cst_11 = arith.constant dense<0.000000e+00> : vector<32xf32>
    %18 = vector.multi_reduction <add>, %17, %cst_11 [0] : vector<4x32xf32> to vector<32xf32>
    %19 = vector.shape_cast %18 : vector<32xf32> to vector<1x32xf32>
    %c0_12 = arith.constant 0 : index
    %c0_13 = arith.constant 0 : index
    %20 = vector.load %arg4[%c0_12, %c0_13] : memref<1x32xf32, #tpu.memory_space<vmem>>, vector<1x32xf32>
    %21 = arith.addf %19, %20 : vector<1x32xf32>
    %cst_14 = arith.constant dense<0xFF800000> : vector<1xf32>
    %22 = vector.multi_reduction <maximumf>, %21, %cst_14 [1] : vector<1x32xf32> to vector<1xf32>
    %23 = vector.shape_cast %22 : vector<1xf32> to vector<1x1xf32>
    %24 = vector.broadcast %23 : vector<1x1xf32> to vector<1x32xf32>
    %25 = arith.subf %21, %24 : vector<1x32xf32>
    %26 = math.exp %25 : vector<1x32xf32>
    %cst_15 = arith.constant dense<0.000000e+00> : vector<1xf32>
    %27 = vector.multi_reduction <add>, %26, %cst_15 [1] : vector<1x32xf32> to vector<1xf32>
    %28 = vector.shape_cast %27 : vector<1xf32> to vector<1x1xf32>
    %29 = vector.broadcast %28 : vector<1x1xf32> to vector<1x32xf32>
    %30 = arith.divf %26, %29 : vector<1x32xf32>
    %c0_16 = arith.constant 0 : index
    %c0_17 = arith.constant 0 : index
    %31 = vector.load %arg5[%c0_16, %c0_17] : memref<8x32xf32, #tpu.memory_space<vmem>>, vector<8x32xf32>
    %32 = vector.broadcast %30 : vector<1x32xf32> to vector<8x32xf32>
    %33 = arith.mulf %31, %32 : vector<8x32xf32>
    %34 = vector.extract_strided_slice %9 {offsets = [0, 0], sizes = [32, 64], strides = [1, 1]} : vector<32x128xf32> to vector<32x64xf32>
    %cst_18 = arith.constant dense<0.000000e+00> : vector<8x64xf32>
    %35 = tpu.matmul %33, %34, %cst_18 {dimension_numbers = #tpu.dot_dimension_numbers<[1], [0], [0], [1], [0, 0, 1, 1], [], []>} : vector<8x32xf32>, vector<32x64xf32>, vector<8x64xf32> -> vector<8x64xf32>
    %c0_19 = arith.constant 0 : index
    %c0_20 = arith.constant 0 : index
    %36 = vector.load %arg6[%c0_19, %c0_20] : memref<8x1xf32, #tpu.memory_space<vmem>>, vector<8x1xf32>
    %37 = vector.broadcast %36 : vector<8x1xf32> to vector<8x64xf32>
    %38 = arith.addf %35, %37 : vector<8x64xf32>
    %cst_21 = arith.constant 0.000000e+00 : f32
    %cst_22 = arith.constant 6.000000e+00 : f32
    %39 = vector.broadcast %cst_21 : f32 to vector<8x64xf32>
    %40 = arith.maximumf %39, %38 : vector<8x64xf32>
    %41 = vector.broadcast %cst_22 : f32 to vector<8x64xf32>
    %42 = arith.minimumf %41, %40 : vector<8x64xf32>
    %c0_23 = arith.constant 0 : index
    %c0_24 = arith.constant 0 : index
    %43 = vector.load %arg7[%c0_23, %c0_24] : memref<8x128xf32, #tpu.memory_space<vmem>>, vector<8x64xf32>
    tpu.vector_store %arg7[%c0_23, %c0_24], %42 {strides = array<i32>} : memref<8x128xf32, #tpu.memory_space<vmem>>, vector<8x64xf32>,
    %44 = vector.extract_strided_slice %0 {offsets = [0, 64], sizes = [4, 64], strides = [1, 1]} : vector<4x128xf32> to vector<4x64xf32>
    %cst_25 = arith.constant dense<0.000000e+00> : vector<4xf32>
    %45 = vector.multi_reduction <add>, %44, %cst_25 [1] : vector<4x64xf32> to vector<4xf32>
    %46 = vector.shape_cast %45 : vector<4xf32> to vector<4x1xf32>
    %cst_26 = arith.constant 6.400000e+01 : f32
    %47 = vector.broadcast %cst_26 : f32 to vector<4x1xf32>
    %48 = arith.divf %46, %47 : vector<4x1xf32>
    %c0_27 = arith.constant 0 : index
    %c0_28 = arith.constant 0 : index
    %49 = vector.load %arg3[%c0_27, %c0_28] : memref<4x32xf32, #tpu.memory_space<vmem>>, vector<4x32xf32>
    %50 = vector.broadcast %48 : vector<4x1xf32> to vector<4x32xf32>
    %51 = arith.mulf %49, %50 : vector<4x32xf32>
    %cst_29 = arith.constant dense<0.000000e+00> : vector<32xf32>
    %52 = vector.multi_reduction <add>, %51, %cst_29 [0] : vector<4x32xf32> to vector<32xf32>
    %53 = vector.shape_cast %52 : vector<32xf32> to vector<1x32xf32>
    %c0_30 = arith.constant 0 : index
    %c0_31 = arith.constant 0 : index
    %54 = vector.load %arg4[%c0_30, %c0_31] : memref<1x32xf32, #tpu.memory_space<vmem>>, vector<1x32xf32>
    %55 = arith.addf %53, %54 : vector<1x32xf32>
    %cst_32 = arith.constant dense<0xFF800000> : vector<1xf32>
    %56 = vector.multi_reduction <maximumf>, %55, %cst_32 [1] : vector<1x32xf32> to vector<1xf32>
    %57 = vector.shape_cast %56 : vector<1xf32> to vector<1x1xf32>
    %58 = vector.broadcast %57 : vector<1x1xf32> to vector<1x32xf32>
    %59 = arith.subf %55, %58 : vector<1x32xf32>
    %60 = math.exp %59 : vector<1x32xf32>
    %cst_33 = arith.constant dense<0.000000e+00> : vector<1xf32>
    %61 = vector.multi_reduction <add>, %60, %cst_33 [1] : vector<1x32xf32> to vector<1xf32>
    %62 = vector.shape_cast %61 : vector<1xf32> to vector<1x1xf32>
    %63 = vector.broadcast %62 : vector<1x1xf32> to vector<1x32xf32>
    %64 = arith.divf %60, %63 : vector<1x32xf32>
    %c0_34 = arith.constant 0 : index
    %c0_35 = arith.constant 0 : index
    %65 = vector.load %arg5[%c0_34, %c0_35] : memref<8x32xf32, #tpu.memory_space<vmem>>, vector<8x32xf32>
    %66 = vector.broadcast %64 : vector<1x32xf32> to vector<8x32xf32>
    %67 = arith.mulf %65, %66 : vector<8x32xf32>
    %68 = vector.extract_strided_slice %9 {offsets = [0, 64], sizes = [32, 64], strides = [1, 1]} : vector<32x128xf32> to vector<32x64xf32>
    %cst_36 = arith.constant dense<0.000000e+00> : vector<8x64xf32>
    %69 = tpu.matmul %67, %68, %cst_36 {dimension_numbers = #tpu.dot_dimension_numbers<[1], [0], [0], [1], [0, 0, 1, 1], [], []>} : vector<8x32xf32>, vector<32x64xf32>, vector<8x64xf32> -> vector<8x64xf32>
    %c0_37 = arith.constant 0 : index
    %c0_38 = arith.constant 0 : index
    %70 = vector.load %arg6[%c0_37, %c0_38] : memref<8x1xf32, #tpu.memory_space<vmem>>, vector<8x1xf32>
    %71 = vector.broadcast %70 : vector<8x1xf32> to vector<8x64xf32>
    %72 = arith.addf %69, %71 : vector<8x64xf32>
    %cst_39 = arith.constant 0.000000e+00 : f32
    %cst_40 = arith.constant 6.000000e+00 : f32
    %73 = vector.broadcast %cst_39 : f32 to vector<8x64xf32>
    %74 = arith.maximumf %73, %72 : vector<8x64xf32>
    %75 = vector.broadcast %cst_40 : f32 to vector<8x64xf32>
    %76 = arith.minimumf %75, %74 : vector<8x64xf32>
    %c0_41 = arith.constant 0 : index
    %c64 = arith.constant 64 : index
    %77 = vector.load %arg7[%c0_41, %c64] : memref<8x128xf32, #tpu.memory_space<vmem>>, vector<8x64xf32>
    tpu.vector_store %arg7[%c0_41, %c64], %76 {strides = array<i32>} : memref<8x128xf32, #tpu.memory_space<vmem>>, vector<8x64xf32>,
    return
  }
}

</mosaic_0001>

<llo_original>
// kernel: tpu_custom_call.1
$region0: #{tpu_custom_call.1}
  #allocation0 [shape = 'u32[]', space=smem, size = 0x4, offset = 0x4, fixed_abs, tag = 'smem constant byte address 0x4 - core index']
  #allocation1 [shape = 'u32[72,128]{1,0:T(1,128)}', space=vmem, size = 0x9000, scoped, tag = 'internal scratch']
  %s0 = inlined_call_operand.vmem [shape: f32[4,128], index: 0, kind: input, shape index: {}]
  %s1 = inlined_call_operand.vmem [shape: f32[32,4], index: 1, kind: input, shape index: {}]
  %s2 = inlined_call_operand.vmem [shape: f32[32,1], index: 2, kind: input, shape index: {}]
  %s3 = inlined_call_operand.vmem [shape: f32[4,32], index: 3, kind: input, shape index: {}]
  %s4 = inlined_call_operand.vmem [shape: f32[1,32], index: 4, kind: input, shape index: {}]
  %s5 = inlined_call_operand.vmem [shape: f32[8,32], index: 5, kind: input, shape index: {}]
  %s6 = inlined_call_operand.vmem [shape: f32[8,1], index: 6, kind: input, shape index: {}]
  %s7 = inlined_call_operand.hbm [shape: f32[8,128], index: 7, kind: output, shape index: {}]
  %s8 = sld [smem:[#allocation0]]
  $region38: #{tpu_custom_call.1} parent=0
    _
  %s10 = ssub.s32 1, %s8
  %s11 = scalar_select 0, %s10, %s8
  $region1: #{tpu_custom_call.1} parent=0
    #allocation2 [shape = 'u8[4096]{0}', space=vmem, size = 0x1000, scoped, tag = 'output window, operand 0, single buffered']
    #allocation3 [shape = 's32[1]{0}', space=sflag, size = 0x4, scoped, tag = 'scoped memory for tpu_custom_call.1']
    %12 = vsyncpa [#allocation3], 0
    // Predicated region
    $region2: #{tpu_custom_call.1} parent=1 // pred_check
      _
    $region3: #{tpu_custom_call.1} parent=1 // pred_check_branch
      %14 = sbr.rel (0) target = $region5
    $region4: #{tpu_custom_call.1} parent=1 // pred_region
      _
    $region5: #{tpu_custom_call.1} parent=1 // pred_fallthru
      _
    // Predicated region
    $region6: #{tpu_custom_call.1} parent=1 // pred_check
      _
    $region7: #{tpu_custom_call.1} parent=1 // pred_check_branch
      %16 = sbr.rel (0) target = $region9
    $region8: #{tpu_custom_call.1} parent=1 // pred_region
      _
    $region9: #{tpu_custom_call.1} parent=1 // pred_fallthru
      _
    // Predicated region
    $region10: #{tpu_custom_call.1} parent=1 // pred_check
      _
    $region11: #{tpu_custom_call.1} parent=1 // pred_check_branch
      %18 = sbr.rel (0) target = $region13
    $region12: #{tpu_custom_call.1} parent=1 // pred_region
      _
    $region13: #{tpu_custom_call.1} parent=1 // pred_fallthru
      _
    // Predicated region
    $region14: #{tpu_custom_call.1} parent=1 // pred_check
      _
    $region15: #{tpu_custom_call.1} parent=1 // pred_check_branch
      %20 = sbr.rel (0) target = $region17
    $region16: #{tpu_custom_call.1} parent=1 // pred_region
      _
    $region17: #{tpu_custom_call.1} parent=1 // pred_fallthru
      _
    // Predicated region
    $region18: #{tpu_custom_call.1} parent=1 // pred_check
      _
    $region19: #{tpu_custom_call.1} parent=1 // pred_check_branch
      %22 = sbr.rel (0) target = $region21
    $region20: #{tpu_custom_call.1} parent=1 // pred_region
      _
    $region21: #{tpu_custom_call.1} parent=1 // pred_fallthru
      _
    // Predicated region
    $region22: #{tpu_custom_call.1} parent=1 // pred_check
      _
    $region23: #{tpu_custom_call.1} parent=1 // pred_check_branch
      %24 = sbr.rel (0) target = $region25
    $region24: #{tpu_custom_call.1} parent=1 // pred_region
      _
    $region25: #{tpu_custom_call.1} parent=1 // pred_fallthru
      _
    // Predicated region
    $region26: #{tpu_custom_call.1} parent=1 // pred_check
      _
    $region27: #{tpu_custom_call.1} parent=1 // pred_check_branch
      %26 = sbr.rel (0) target = $region29
    $region28: #{tpu_custom_call.1} parent=1 // pred_region
      _
    $region29: #{tpu_custom_call.1} parent=1 // pred_fallthru
      _
    %v27 = vld [vmem:[%s0] sm:$0xf]
    %v28 = vld [vmem:[%s1] sm:$0xff]
    %v29 = vld [vmem:[%s1 + $0x8] sm:$0xff]
    %v30 = vld [vmem:[%s1 + $0x10] sm:$0xff]
    %v31 = vld [vmem:[%s1 + $0x18] sm:$0xff]
    %v32 = vld [vmem:[%s2] sm:$0xff]
    %v33 = vld [vmem:[%s2 + $0x8] sm:$0xff]
    %v34 = vld [vmem:[%s2 + $0x10] sm:$0xff]
    %v35 = vld [vmem:[%s2 + $0x18] sm:$0xff]
    %37 = vset.pattern.permute.xlu0 0
    %38 = vperm.xlu0 %37, %v32
    %v39 = vpop.permute.xlu0 %38
    %42 = vset.pattern.permute.xlu0 0
    %43 = vperm.xlu0 %42, %v33
    %v44 = vpop.permute.xlu0 %43
    %47 = vset.pattern.permute.xlu0 0
    %48 = vperm.xlu0 %47, %v34
    %v49 = vpop.permute.xlu0 %48
    %52 = vset.pattern.permute.xlu0 0
    %53 = vperm.xlu0 %52, %v35
    %v54 = vpop.permute.xlu0 %53
    %vm56 = vcmask 31744
    %v58 = vsel %vm56, %v28, 0
    %v61 = vsel %vm56, %v29, 0
    %v64 = vsel %vm56, %v30, 0
    %v67 = vsel %vm56, %v31, 0
    %vm69 = vcmask 1043456
    %v71 = vsel %vm69, %v27, 0
    %73 = vmatpush.msra.mxu0 0.0
    %74 = vmatpush.msra.mxu0 0.0
    %75 = vmatpush.msra.mxu0 0.0
    %76 = vmatpush.msra.mxu0 0.0
    %77 = vmatpush.msra.mxu0 0.0
    %78 = vmatpush.msra.mxu0 0.0
    %79 = vmatpush.msra.mxu0 0.0
    %80 = vmatpush.msra.mxu0 0.0
    %81 = vmatpush.msra.mxu0 0.0
    %82 = vmatpush.msra.mxu0 0.0
    %83 = vmatpush.msra.mxu0 0.0
    %84 = vmatpush.msra.mxu0 0.0
    %85 = vmatpush.msra.mxu0 0.0
    %86 = vmatpush.msra.mxu0 0.0
    %87 = vmatpush.msra.mxu0 0.0
    %88 = vmatpush.msra.mxu0 %v71
    %89 = vmatmul.f32.gmra.mxu0 %v58
    %v90 = vpop.f32.mrf.mxu0
    %v91 = vadd.f32 %v39, %v90
    %92 = vmatmul.f32.gmra.mxu0 %v61
    %v93 = vpop.f32.mrf.mxu0
    %v94 = vadd.f32 %v44, %v93
    %95 = vmatmul.f32.gmra.mxu0 %v64
    %v96 = vpop.f32.mrf.mxu0
    %v97 = vadd.f32 %v49, %v96
    %98 = vmatmul.f32.gmra.mxu0 %v67
    %v99 = vpop.f32.mrf.mxu0
    %v100 = vadd.f32 %v54, %v99
    %101 = vdwg.mxu0
    %v102 = vmax.f32 %v91, 0.0
    %v103 = vmax.f32 %v94, 0.0
    %v104 = vmax.f32 %v97, 0.0
    %v105 = vmax.f32 %v100, 0.0
    %v106 = vmin.f32 %v102, 6.0
    %v107 = vmin.f32 %v103, 6.0
    %v108 = vmin.f32 %v104, 6.0
    %v109 = vmin.f32 %v105, 6.0
    %vm110 = vcmask 519168
    %v111 = vsel %vm110, %v27, 0.0
    %112 = vadd.xlane.f32.xlu0 %v111
    %v113 = vpop.xlane.xlu0 %112
    %v114 = vrcp.pop 64.0
    %v115 = vmul.f32 64.0, %v114
    %v116 = vsub.f32 1.0, %v115
    %v117 = vmul.f32 %v114, %v116
    %v118 = vadd.f32 %v114, %v117
    %vm119 = vweird.f32 %v114
    %v120 = vsel %vm119, %v114, %v118
    %v121 = vmul.f32 %v113, %v120
    %v122 = vld [vmem:[%s3] sm:$0xf]
    %v123 = vmul.f32 %v122, %v121
    %vm124 = vcmask 257024
    %v125 = vsel %vm124, %v123, 0.0
    %v126 = vrot.slane %v125, 4
    %v127 = vadd.f32 %v125, %v126
    %v128 = vrot.slane %v127, 2
    %v129 = vadd.f32 %v127, %v128
    %v130 = vrot.slane %v129, 1
    %v131 = vadd.f32 %v129, %v130
    %v132 = vld [vmem:[%s4] sm:$0x1]
    %v133 = vadd.f32 %v131, %v132
    %vm134 = vcmask 253952
    %v135 = vsel %vm134, %v133, -inf
    %136 = vmax.xlane.f32.xlu0 %v135
    %v137 = vpop.xlane.xlu0 %136
    %v138 = vsub.f32 %v133, %v137
    %v139 = vmul.f32 %v138, 1.442695
    %v140 = vpow.pop %v139
    %v141 = vsel %vm134, %v140, 0.0
    %142 = vadd.xlane.f32.xlu0 %v141
    %v143 = vpop.xlane.xlu0 %142
    %v144 = vrcp.pop %v143
    %v145 = vmul.f32 %v143, %v144
    %v146 = vsub.f32 1.0, %v145
    %v147 = vmul.f32 %v144, %v146
    %v148 = vadd.f32 %v144, %v147
    %vm149 = vweird.f32 %v143
    %vm150 = vweird.f32 %v144
    %vm151 = vmor %vm149, %vm150
    %v152 = vsel %vm151, %v144, %v148
    %v153 = vand.u32 2147483647, %v143
    %vm154 = vcmp.eq.f32.partialorder %v153, 8.507059e+37
    %v155 = vand.u32 %v143, 2147483648
    %v156 = vor.u32 1.1754944e-38, %v155
    %v157 = vsel %vm154, %v156, %v152
    %v158 = vmul.f32 %v140, %v157
    %v159 = vld [vmem:[%s5] sm:$0xff]
    %v160 = vperm.slane %v158, 0
    %v161 = vmul.f32 %v159, %v160
    %v162 = vld [vmem:[%s6] sm:$0xff]
    %164 = vset.pattern.permute.xlu0 0
    %165 = vperm.xlu0 %164, %v162
    %v166 = vpop.permute.xlu0 %165
    %vm168 = vcmask 261120
    %v170 = vsel %vm168, %v161, 0
    %172 = vmatpush.msra.mxu0 0.0
    %173 = vmatpush.msra.mxu0 0.0
    %174 = vmatpush.msra.mxu0 0.0
    %175 = vmatpush.msra.mxu0 0.0
    %176 = vmatpush.msra.mxu0 0.0
    %177 = vmatpush.msra.mxu0 0.0
    %178 = vmatpush.msra.mxu0 0.0
    %179 = vmatpush.msra.mxu0 0.0
    %180 = vmatpush.msra.mxu0 0.0
    %181 = vmatpush.msra.mxu0 0.0
    %182 = vmatpush.msra.mxu0 0.0
    %183 = vmatpush.msra.mxu0 0.0
    %184 = vmatpush.msra.mxu0 %v109
    %185 = vmatpush.msra.mxu0 %v108
    %186 = vmatpush.msra.mxu0 %v107
    %187 = vmatpush.msra.mxu0 %v106
    %188 = vmatmul.f32.gmra.mxu0 %v170
    %v189 = vpop.f32.mrf.mxu0
    %v190 = vadd.f32 %v166, %v189
    %191 = vdwg.mxu0
    %v192 = vmax.f32 %v190, 0.0
    %v193 = vmin.f32 %v192, 6.0
    %vm194 = vcmask 523264
    %195 = vst.msk [vmem:[#allocation2] sm:$0xff] %vm194, %v193
    %196 = vrot.lane.b32.xlu0 %v27, 64
    %v197 = vpop.permute.xlu0 %196
    %v199 = vsel %vm110, %v197, 0.0
    %200 = vadd.xlane.f32.xlu0 %v199
    %v201 = vpop.xlane.xlu0 %200
    %v202 = vmul.f32 %v201, %v120
    %v203 = vld [vmem:[%s3] sm:$0xf]
    %v204 = vmul.f32 %v203, %v202
    %v205 = vsel %vm124, %v204, 0.0
    %v206 = vrot.slane %v205, 4
    %v207 = vadd.f32 %v205, %v206
    %v208 = vrot.slane %v207, 2
    %v209 = vadd.f32 %v207, %v208
    %v210 = vrot.slane %v209, 1
    %v211 = vadd.f32 %v209, %v210
    %v212 = vld [vmem:[%s4] sm:$0x1]
    %v213 = vadd.f32 %v211, %v212
    %v214 = vsel %vm134, %v213, -inf
    %215 = vmax.xlane.f32.xlu0 %v214
    %v216 = vpop.xlane.xlu0 %215
    %v217 = vsub.f32 %v213, %v216
    %v218 = vmul.f32 %v217, 1.442695
    %v219 = vpow.pop %v218
    %v220 = vsel %vm134, %v219, 0.0
    %221 = vadd.xlane.f32.xlu0 %v220
    %v222 = vpop.xlane.xlu0 %221
    %v223 = vrcp.pop %v222
    %v224 = vmul.f32 %v222, %v223
    %v225 = vsub.f32 1.0, %v224
    %v226 = vmul.f32 %v223, %v225
    %v227 = vadd.f32 %v223, %v226
    %vm228 = vweird.f32 %v222
    %vm229 = vweird.f32 %v223
    %vm230 = vmor %vm228, %vm229
    %v231 = vsel %vm230, %v223, %v227
    %v232 = vand.u32 2147483647, %v222
    %vm233 = vcmp.eq.f32.partialorder %v232, 8.507059e+37
    %v234 = vand.u32 %v222, 2147483648
    %v235 = vor.u32 1.1754944e-38, %v234
    %v236 = vsel %vm233, %v235, %v231
    %v237 = vmul.f32 %v219, %v236
    %v238 = vld [vmem:[%s5] sm:$0xff]
    %v239 = vperm.slane %v237, 0
    %v240 = vmul.f32 %v238, %v239
    %v241 = vld [vmem:[%s6] sm:$0xff]
    %243 = vset.pattern.permute.xlu0 0
    %244 = vperm.xlu0 %243, %v241
    %v245 = vpop.permute.xlu0 %244
    %251 = vrot.lane.b32.xlu0 %v106, 64
    %v252 = vpop.permute.xlu0 %251
    %253 = vrot.lane.b32.xlu0 %v107, 64
    %v254 = vpop.permute.xlu0 %253
    %255 = vrot.lane.b32.xlu0 %v108, 64
    %v256 = vpop.permute.xlu0 %255
    %257 = vrot.lane.b32.xlu0 %v109, 64
    %v258 = vpop.permute.xlu0 %257
    %v264 = vsel %vm168, %v240, 0
    %266 = vmatpush.msra.mxu0 0.0
    %267 = vmatpush.msra.mxu0 0.0
    %268 = vmatpush.msra.mxu0 0.0
    %269 = vmatpush.msra.mxu0 0.0
    %270 = vmatpush.msra.mxu0 0.0
    %271 = vmatpush.msra.mxu0 0.0
    %272 = vmatpush.msra.mxu0 0.0
    %273 = vmatpush.msra.mxu0 0.0
    %274 = vmatpush.msra.mxu0 0.0
    %275 = vmatpush.msra.mxu0 0.0
    %276 = vmatpush.msra.mxu0 0.0
    %277 = vmatpush.msra.mxu0 0.0
    %278 = vmatpush.msra.mxu0 %v258
    %279 = vmatpush.msra.mxu0 %v256
    %280 = vmatpush.msra.mxu0 %v254
    %281 = vmatpush.msra.mxu0 %v252
    %282 = vmatmul.f32.gmra.mxu0 %v264
    %v283 = vpop.f32.mrf.mxu0
    %v284 = vadd.f32 %v245, %v283
    %285 = vdwg.mxu0
    %v286 = vmax.f32 %v284, 0.0
    %v287 = vmin.f32 %v286, 6.0
    %289 = vrot.lane.b32.xlu0 %v287, 64
    %v290 = vpop.permute.xlu0 %289
    %vm292 = vcmask 1048064
    %293 = vst.msk [vmem:[#allocation2] sm:$0xff] %vm292, %v290
    // Predicated region
    $region30: #{tpu_custom_call.1} parent=1 // pred_check
      _
    $region31: #{tpu_custom_call.1} parent=1 // pred_check_branch
      %295 = sbr.rel (0) target = $region33
    $region32: #{tpu_custom_call.1} parent=1 // pred_region
      %297 = vsyncadd [#allocation3], 0
      %s299 = sshll.u32 [#allocation2], 4
      %s300 = int_to_ptr.vmem [resolvable:$true] %s299
      %s301 = sshll.u32 %s7, 4
      %s302 = int_to_ptr.hbm [resolvable:$true] %s301
      %304 = dma.vmem_to_hbm [thread:$0]  %s300, 128, %s302, [#allocation3]
    $region33: #{tpu_custom_call.1} parent=1 // pred_fallthru
      _
    // Predicated region
    $region34: #{tpu_custom_call.1} parent=1 // pred_check
      _
    $region35: #{tpu_custom_call.1} parent=1 // pred_check_branch
      %306 = sbr.rel (0) target = $region37
    $region36: #{tpu_custom_call.1} parent=1 // pred_region
      %308 = dma.done [#allocation3], 128
    $region37: #{tpu_custom_call.1} parent=1 // pred_fallthru
      _
    %309 = vsyncpa [#allocation3], 1

</llo_original>
